<compile_context>
chip_gen: v7x
topology: tpu7x:2x2x1
jax: 0.10.0
libtpu: 0.0.40
codegen_flags: <defaults>
</compile_context>

<pallas_src>
import jax
import jax.numpy as jnp
import numpy as np
from jax.experimental import pallas as pl
from jax.experimental.pallas import tpu as pltpu


def _round_up(x, m):
    return ((x + m - 1) // m) * m


def _pick_row_tile(m, tm_req):
    """Row tile: big enough to amortize per-grid-step overhead, small enough
    that the 1-D parallel grid has >= 2 steps (v7x has 2 TensorCores)."""
    tm = min(_round_up(max(tm_req, 8), 8), _round_up(m, 8))
    if m > 8:
        tm = min(tm, _round_up((m + 1) // 2, 8))
    return max(tm, 8)


def _packed_kernel(r_ref, c_ref, br_ref, bc_ref, out_ref):
    """Two frames per row.

    y lanes: [0,64) Re(frame 2p) | [64,128) Re(frame 2p+1)
             | [128,192) Im(frame 2p) | [192,256) Im(frame 2p+1)
    """
    y = jnp.dot(r_ref[...], br_ref[...], preferred_element_type=jnp.float32)
    y = y + jnp.dot(c_ref[...], bc_ref[...], preferred_element_type=jnp.float32)
    p = y * y
    half = p.shape[-1] // 2                      # 128: vreg-aligned slices
    out_ref[...] = p[:, :half] + p[:, half:]     # |X|^2, 128-lane unmasked vst


def _general_kernel(f_ref, b_ref, out_ref):
    """One frame per row; basis = [hann*cos | hann*(-sin)], each half 128-aligned."""
    y = jnp.dot(f_ref[...], b_ref[...], preferred_element_type=jnp.float32)
    p = y * y
    half = p.shape[-1] // 2
    out_ref[...] = p[:, :half] + p[:, half:]


def spectrogram_fixed(x, *, n_fft=64, win_length=None, hop_length=None, tm=1024):
    """SpectrogramFixed.forward: torchaudio Spectrogram(x)[..., :-1]."""
    win_length = n_fft if win_length is None else win_length
    hop_length = win_length // 2 if hop_length is None else hop_length
    assert win_length == n_fft, "win_length != n_fft padding not implemented"

    x = x.astype(jnp.float32)
    B, T = x.shape
    n_freq = n_fft // 2 + 1
    pad = n_fft // 2
    assert T > pad, "reflect padding requires T > n_fft // 2"

    # --- center (reflect) pad --------------------------------------------------
    x_pad = jnp.pad(x, ((0, 0), (pad, pad)), mode="reflect")       # (B, T + n_fft)
    L = x_pad.shape[1]
    n_frames = 1 + (L - n_fft) // hop_length
    n_keep = n_frames - 1                                          # [..., :-1]
    assert n_keep >= 1, "input too short for one kept frame"

    # --- window-folded rDFT pieces (built in f64, stored f32) ------------------
    n = np.arange(n_fft, dtype=np.float64)
    window = 0.5 - 0.5 * np.cos(2.0 * np.pi * n / n_fft)           # periodic Hann
    k = np.arange(n_freq, dtype=np.float64)
    ang = 2.0 * np.pi * np.outer(n, k) / n_fft                     # (n_fft, n_freq)
    wc = window[:, None] * np.cos(ang)                             # -> Re
    ws = -window[:, None] * np.sin(ang)                            # -> Im

    hop = hop_length
    packed = (2 * hop == n_fft) and (n_freq <= 64)

    if packed:
        # ===== packed path: 2 frames per row, frames read straight from x_pad ==
        F = 64                      # lanes per frame block
        half = 2 * F                # 128 output lanes (|X0|^2 | |X1|^2)
        total = 2 * half            # 256 matmul lanes (Re0|Re1|Im0|Im1)
        n_pack = (n_keep + 1) // 2

        #   R[p]  = x_pad[p*n_fft : (p+1)*n_fft]          (free reshape, no copy blowup)
        #   C2[p] = x_pad[(p+1)*n_fft : (p+1)*n_fft + hop] (tail of frame 2p+1)
        need = (n_pack + 1) * n_fft
        if need > L:
            # zeros only land in lanes/frames that are sliced away below
            x_pad = jnp.pad(x_pad, ((0, 0), (0, need - L)))
        r = x_pad[:, : n_pack * n_fft].reshape(B * n_pack, n_fft)
        c2 = (x_pad[:, n_fft: n_fft + n_pack * n_fft]
              .reshape(B, n_pack, n_fft)[:, :, :hop]
              .reshape(B * n_pack, hop))

        m_rows = B * n_pack
        tm_eff = _pick_row_tile(m_rows, tm)
        mp = _round_up(m_rows, tm_eff)
        if mp != m_rows:
            r = jnp.pad(r, ((0, mp - m_rows), (0, 0)))
            c2 = jnp.pad(c2, ((0, mp - m_rows), (0, 0)))

        # block-structured, window-folded bases
        basis_r = np.zeros((n_fft, total), dtype=np.float64)
        basis_r[:, :n_freq] = wc                                   # frame 2p, Re
        basis_r[:, half:half + n_freq] = ws                        # frame 2p, Im
        basis_r[hop:, F:F + n_freq] = wc[: n_fft - hop]            # frame 2p+1, Re (head)
        basis_r[hop:, half + F: half + F + n_freq] = ws[: n_fft - hop]
        basis_c = np.zeros((hop, total), dtype=np.float64)
        basis_c[:, F:F + n_freq] = wc[hop:]                        # frame 2p+1, Re (tail)
        basis_c[:, half + F: half + F + n_freq] = ws[hop:]
        basis_r = jnp.asarray(basis_r, jnp.float32)
        basis_c = jnp.asarray(basis_c, jnp.float32)

        out = pl.pallas_call(
            _packed_kernel,
            out_shape=jax.ShapeDtypeStruct((mp, half), jnp.float32),
            grid=(mp // tm_eff,),
            in_specs=[
                pl.BlockSpec((tm_eff, n_fft), lambda i: (i, 0)),   # R rows
                pl.BlockSpec((tm_eff, hop), lambda i: (i, 0)),     # C2 rows
                pl.BlockSpec((n_fft, total), lambda i: (0, 0)),    # constant basis
                pl.BlockSpec((hop, total), lambda i: (0, 0)),      # constant basis
            ],
            out_specs=pl.BlockSpec((tm_eff, half), lambda i: (i, 0)),
            compiler_params=pltpu.CompilerParams(
                dimension_semantics=("parallel",)),
        )(r, c2, basis_r, basis_c)

        # (mp, 128) -> (B, 2*n_pack, 64) -> keep frames/freqs -> (B, n_freq, frames)
        out = out[:m_rows].reshape(B, 2 * n_pack, F)[:, :n_keep, :n_freq]
        return jnp.transpose(out, (0, 2, 1))

    # ===== general fallback (n_freq > 64 or hop != n_fft//2) ====================
    if n_fft % hop == 0:
        r_chunks = n_fft // hop
        chunks = [
            x_pad[:, j * hop: j * hop + n_keep * hop].reshape(B, n_keep, hop)
            for j in range(r_chunks)
        ]
        frames = jnp.concatenate(chunks, axis=-1)                  # (B, n_keep, n_fft)
    else:
        idx = (jnp.arange(n_keep)[:, None] * hop
               + jnp.arange(n_fft)[None, :])
        frames = x_pad[:, idx]                                     # (B, n_keep, n_fft)
    frames = frames.reshape(B * n_keep, n_fft)

    m_rows = B * n_keep
    tm_eff = _pick_row_tile(m_rows, tm)
    mp = _round_up(m_rows, tm_eff)
    if mp != m_rows:
        frames = jnp.pad(frames, ((0, mp - m_rows), (0, 0)))

    half = _round_up(n_freq, 128)          # keep the fold slices vreg-aligned
    total = 2 * half
    basis = np.zeros((n_fft, total), dtype=np.float64)
    basis[:, :n_freq] = wc
    basis[:, half:half + n_freq] = ws
    basis = jnp.asarray(basis, jnp.float32)

    out = pl.pallas_call(
        _general_kernel,
        out_shape=jax.ShapeDtypeStruct((mp, half), jnp.float32),
        grid=(mp // tm_eff,),
        in_specs=[
            pl.BlockSpec((tm_eff, n_fft), lambda i: (i, 0)),
            pl.BlockSpec((n_fft, total), lambda i: (0, 0)),
        ],
        out_specs=pl.BlockSpec((tm_eff, half), lambda i: (i, 0)),
        compiler_params=pltpu.CompilerParams(
            dimension_semantics=("parallel",)),
    )(frames, basis)

    out = out[:m_rows, :n_freq].reshape(B, n_keep, n_freq)
    return jnp.transpose(out, (0, 2, 1))


def _reference(x, *, n_fft=64, win_length=None, hop_length=None):
    """Pure-JAX reference (rfft-based) matching torchaudio Spectrogram[..., :-1]."""
    win_length = n_fft if win_length is None else win_length
    hop_length = win_length // 2 if hop_length is None else hop_length
    x = x.astype(jnp.float32)
    pad = n_fft // 2
    x_pad = jnp.pad(x, ((0, 0), (pad, pad)), mode="reflect")
    n_frames = 1 + (x_pad.shape[1] - n_fft) // hop_length
    idx = jnp.arange(n_frames)[:, None] * hop_length + jnp.arange(n_fft)[None, :]
    frames = x_pad[:, idx]                                          # (B, n_frames, n_fft)
    n = np.arange(n_fft)
    window = jnp.asarray(0.5 - 0.5 * np.cos(2.0 * np.pi * n / n_fft), jnp.float32)
    spec = jnp.fft.rfft(frames * window[None, None, :], n=n_fft, axis=-1)
    power = jnp.abs(spec) ** 2                                      # (B, n_frames, n_freq)
    return jnp.transpose(power, (0, 2, 1))[..., :-1]                # drop last frame


if __name__ == "__main__":
    key = jax.random.PRNGKey(0)
    B, T = 2, 256
    N_FFT = 64
    x = jax.random.normal(key, (B, T), dtype=jnp.float32)

    fn = jax.jit(lambda v: spectrogram_fixed(v, n_fft=N_FFT))
    out = jax.block_until_ready(fn(x))

    ref = _reference(x, n_fft=N_FFT)
    assert out.shape == ref.shape, (out.shape, ref.shape)

    err = float(jnp.max(jnp.abs(out - ref)))
    scale = float(jnp.max(jnp.abs(ref)))
    assert err <= 2e-2 * scale + 1e-3, ("numerical mismatch", err, scale)

    print("KERNEL_OK")
</pallas_src>

<mosaic_0001>
module attributes {stable_mosaic.version = 11 : i64} {
  func.func @_packed_kernel(%arg0: i32, %arg1: memref<8x64xf32, #tpu.memory_space<vmem>>, %arg2: memref<8x32xf32, #tpu.memory_space<vmem>>, %arg3: memref<64x256xf32, #tpu.memory_space<vmem>>, %arg4: memref<32x256xf32, #tpu.memory_space<vmem>>, %arg5: memref<8x128xf32, #tpu.memory_space<vmem>>) attributes {dimension_semantics = [#tpu.dimension_semantics<parallel>], iteration_bounds = array<i64: 1>, scalar_prefetch = 0 : i64, scratch_operands = 0 : i64, tpu.core_type = #tpu.core_type<tc>, window_params = [{transform_indices = @transform_0, window_bounds = array<i64: 8, 64>}, {transform_indices = @transform_1, window_bounds = array<i64: 8, 32>}, {pipeline_mode = #tpu.pipeline_mode<synchronous>, transform_indices = @transform_2, window_bounds = array<i64: 64, 256>}, {pipeline_mode = #tpu.pipeline_mode<synchronous>, transform_indices = @transform_3, window_bounds = array<i64: 32, 256>}, {transform_indices = @transform_4, window_bounds = array<i64: 8, 128>}]} {
    %c0 = arith.constant 0 : index
    %c0_0 = arith.constant 0 : index
    %0 = vector.load %arg1[%c0, %c0_0] : memref<8x64xf32, #tpu.memory_space<vmem>>, vector<8x64xf32>
    %c0_1 = arith.constant 0 : index
    %c0_2 = arith.constant 0 : index
    %1 = vector.load %arg3[%c0_1, %c0_2] : memref<64x256xf32, #tpu.memory_space<vmem>>, vector<64x256xf32>
    %cst = arith.constant dense<0.000000e+00> : vector<8x256xf32>
    %2 = tpu.matmul %0, %1, %cst {dimension_numbers = #tpu.dot_dimension_numbers<[1], [0], [0], [1], [0, 0, 1, 1], [], []>} : vector<8x64xf32>, vector<64x256xf32>, vector<8x256xf32> -> vector<8x256xf32>
    %c0_3 = arith.constant 0 : index
    %c0_4 = arith.constant 0 : index
    %3 = vector.load %arg2[%c0_3, %c0_4] : memref<8x32xf32, #tpu.memory_space<vmem>>, vector<8x32xf32>
    %c0_5 = arith.constant 0 : index
    %c0_6 = arith.constant 0 : index
    %4 = vector.load %arg4[%c0_5, %c0_6] : memref<32x256xf32, #tpu.memory_space<vmem>>, vector<32x256xf32>
    %cst_7 = arith.constant dense<0.000000e+00> : vector<8x256xf32>
    %5 = tpu.matmul %3, %4, %cst_7 {dimension_numbers = #tpu.dot_dimension_numbers<[1], [0], [0], [1], [0, 0, 1, 1], [], []>} : vector<8x32xf32>, vector<32x256xf32>, vector<8x256xf32> -> vector<8x256xf32>
    %6 = arith.addf %2, %5 : vector<8x256xf32>
    %7 = arith.mulf %6, %6 : vector<8x256xf32>
    %8 = vector.extract_strided_slice %7 {offsets = [0, 0], sizes = [8, 128], strides = [1, 1]} : vector<8x256xf32> to vector<8x128xf32>
    %9 = vector.extract_strided_slice %7 {offsets = [0, 128], sizes = [8, 128], strides = [1, 1]} : vector<8x256xf32> to vector<8x128xf32>
    %10 = arith.addf %8, %9 : vector<8x128xf32>
    %c0_8 = arith.constant 0 : index
    %c0_9 = arith.constant 0 : index
    %11 = vector.load %arg5[%c0_8, %c0_9] : memref<8x128xf32, #tpu.memory_space<vmem>>, vector<8x128xf32>
    tpu.vector_store %arg5[%c0_8, %c0_9], %10 {strides = array<i32>} : memref<8x128xf32, #tpu.memory_space<vmem>>, vector<8x128xf32>,
    return
  }
  func.func @transform_0(%arg0: i32) -> (i32, i32) {
    %c0_i32 = arith.constant 0 : i32
    %c0_i32_0 = arith.constant 0 : i32
    return %arg0, %c0_i32 : i32, i32
  }
  func.func @transform_1(%arg0: i32) -> (i32, i32) {
    %c0_i32 = arith.constant 0 : i32
    %c0_i32_0 = arith.constant 0 : i32
    return %arg0, %c0_i32 : i32, i32
  }
  func.func @transform_2(%arg0: i32) -> (i32, i32) {
    %c0_i32 = arith.constant 0 : i32
    %c0_i32_0 = arith.constant 0 : i32
    %c0_i32_1 = arith.constant 0 : i32
    return %c0_i32, %c0_i32_0 : i32, i32
  }
  func.func @transform_3(%arg0: i32) -> (i32, i32) {
    %c0_i32 = arith.constant 0 : i32
    %c0_i32_0 = arith.constant 0 : i32
    %c0_i32_1 = arith.constant 0 : i32
    return %c0_i32, %c0_i32_0 : i32, i32
  }
  func.func @transform_4(%arg0: i32) -> (i32, i32) {
    %c0_i32 = arith.constant 0 : i32
    %c0_i32_0 = arith.constant 0 : i32
    return %arg0, %c0_i32 : i32, i32
  }
}

</mosaic_0001>

<llo_original>
// kernel: _lambda_.1
$region0: #{_lambda_.1}
  #allocation0 [shape = 'u32[]', space=smem, size = 0x4, offset = 0x4, fixed_abs, tag = 'smem constant byte address 0x4 - core index']
  #allocation1 [shape = 'u32[144,128]{1,0:T(1,128)}', space=vmem, size = 0x12000, scoped, tag = 'internal scratch']
  %s0 = inlined_call_operand.vmem [shape: f32[8,64], index: 0, kind: input, shape index: {}]
  %s1 = inlined_call_operand.vmem [shape: f32[8,32], index: 1, kind: input, shape index: {}]
  %s2 = inlined_call_operand.hbm [shape: f32[64,256], index: 2, kind: input, shape index: {}]
  %s3 = inlined_call_operand.vmem [shape: f32[32,256], index: 3, kind: input, shape index: {}]
  %s4 = inlined_call_operand.vmem [shape: f32[8,128], index: 4, kind: output, shape index: {}]
  %s5 = sld [smem:[#allocation0]]
  $region30: #{_lambda_.1} parent=0
    _
  %s7 = ssub.s32 1, %s5
  %s8 = scalar_select 0, %s7, %s5
  $region1: #{_lambda_.1} parent=0
    #allocation2 [shape = 'u8[65536]{0}', space=vmem, size = 0x10000, scoped, tag = 'input window, operand 2, single buffered']
    #allocation3 [shape = 's32[1]{0}', space=sflag, size = 0x4, scoped, tag = 'scoped memory for _lambda_.1']
    %9 = vsyncpa [#allocation3], 0
    // Predicated region
    $region2: #{_lambda_.1} parent=1 // pred_check
      _
    $region3: #{_lambda_.1} parent=1 // pred_check_branch
      %11 = sbr.rel (0) target = $region5
    $region4: #{_lambda_.1} parent=1 // pred_region
      _
    $region5: #{_lambda_.1} parent=1 // pred_fallthru
      _
    // Predicated region
    $region6: #{_lambda_.1} parent=1 // pred_check
      _
    $region7: #{_lambda_.1} parent=1 // pred_check_branch
      %13 = sbr.rel (0) target = $region9
    $region8: #{_lambda_.1} parent=1 // pred_region
      _
    $region9: #{_lambda_.1} parent=1 // pred_fallthru
      _
    // Predicated region
    $region10: #{_lambda_.1} parent=1 // pred_check
      _
    $region11: #{_lambda_.1} parent=1 // pred_check_branch
      %15 = sbr.rel (0) target = $region13
    $region12: #{_lambda_.1} parent=1 // pred_region
      %s17 = ssub.s32 2048, 2048
      %18 = vsyncadd [#allocation3], %s17
      %s19 = sshll.u32 [#allocation2], 4
      %s20 = int_to_ptr.vmem [resolvable:$true] %s19
      %25 = dma.hbm_to_vmem [thread:$0]  %s2, 2048, %s20, [#allocation3], 256, 256, 16
    $region13: #{_lambda_.1} parent=1 // pred_fallthru
      _
    // Predicated region
    $region14: #{_lambda_.1} parent=1 // pred_check
      _
    $region15: #{_lambda_.1} parent=1 // pred_check_branch
      %27 = sbr.rel (0) target = $region17
    $region16: #{_lambda_.1} parent=1 // pred_region
      _
    $region17: #{_lambda_.1} parent=1 // pred_fallthru
      _
    // Predicated region
    $region18: #{_lambda_.1} parent=1 // pred_check
      _
    $region19: #{_lambda_.1} parent=1 // pred_check_branch
      %29 = sbr.rel (0) target = $region21
    $region20: #{_lambda_.1} parent=1 // pred_region
      %30 = dma.done [#allocation3], 2048
    $region21: #{_lambda_.1} parent=1 // pred_fallthru
      _
    %v31 = vld [vmem:[%s0] sm:$0xff]
    %v32 = vld [vmem:[#allocation2] sm:$0xff]
    %v33 = vld [vmem:[#allocation2 + $0x8] sm:$0xff]
    %v34 = vld [vmem:[#allocation2 + $0x10] sm:$0xff]
    %v35 = vld [vmem:[#allocation2 + $0x18] sm:$0xff]
    %v36 = vld [vmem:[#allocation2 + $0x20] sm:$0xff]
    %v37 = vld [vmem:[#allocation2 + $0x28] sm:$0xff]
    %v38 = vld [vmem:[#allocation2 + $0x30] sm:$0xff]
    %v39 = vld [vmem:[#allocation2 + $0x38] sm:$0xff]
    %v40 = vld [vmem:[#allocation2 + $0x40] sm:$0xff]
    %v41 = vld [vmem:[#allocation2 + $0x48] sm:$0xff]
    %v42 = vld [vmem:[#allocation2 + $0x50] sm:$0xff]
    %v43 = vld [vmem:[#allocation2 + $0x58] sm:$0xff]
    %v44 = vld [vmem:[#allocation2 + $0x60] sm:$0xff]
    %v45 = vld [vmem:[#allocation2 + $0x68] sm:$0xff]
    %v46 = vld [vmem:[#allocation2 + $0x70] sm:$0xff]
    %v47 = vld [vmem:[#allocation2 + $0x78] sm:$0xff]
    %v48 = vld [vmem:[%s1] sm:$0xff]
    %v49 = vld [vmem:[%s3] sm:$0xff]
    %v50 = vld [vmem:[%s3 + $0x8] sm:$0xff]
    %v51 = vld [vmem:[%s3 + $0x10] sm:$0xff]
    %v52 = vld [vmem:[%s3 + $0x18] sm:$0xff]
    %v53 = vld [vmem:[%s3 + $0x20] sm:$0xff]
    %v54 = vld [vmem:[%s3 + $0x28] sm:$0xff]
    %v55 = vld [vmem:[%s3 + $0x30] sm:$0xff]
    %v56 = vld [vmem:[%s3 + $0x38] sm:$0xff]
    %vm57 = vcmask 261120
    %v59 = vsel %vm57, %v48, 0
    %61 = vmatprep.subr.mxu0 %v50
    %62 = vmatpush1.msra.mxu0 %v49
    %63 = vmatprep.subr.mxu0 %v52
    %64 = vmatpush1.msra.mxu0 %v51
    %65 = vmatprep.subr.mxu0 %v54
    %66 = vmatpush1.msra.mxu0 %v53
    %67 = vmatprep.subr.mxu0 %v56
    %68 = vmatpush1.msra.mxu0 %v55
    %69 = vmatprep.subr.mxu0 0.0
    %70 = vmatpush1.msra.mxu0 0.0
    %71 = vmatprep.subr.mxu0 0.0
    %72 = vmatpush1.msra.mxu0 0.0
    %73 = vmatprep.subr.mxu0 0.0
    %74 = vmatpush1.msra.mxu0 0.0
    %75 = vmatprep.subr.mxu0 0.0
    %76 = vmatpush1.msra.mxu0 0.0
    %77 = vmatprep.subr.mxu0 0.0
    %78 = vmatpush1.msra.mxu0 0.0
    %79 = vmatprep.subr.mxu0 0.0
    %80 = vmatpush1.msra.mxu0 0.0
    %81 = vmatprep.subr.mxu0 0.0
    %82 = vmatpush1.msra.mxu0 0.0
    %83 = vmatprep.subr.mxu0 0.0
    %84 = vmatpush1.msra.mxu0 0.0
    %85 = vmatprep.subr.mxu0 0.0
    %86 = vmatpush1.msra.mxu0 0.0
    %87 = vmatprep.subr.mxu0 0.0
    %88 = vmatpush1.msra.mxu0 0.0
    %89 = vmatprep.subr.mxu0 0.0
    %90 = vmatpush1.msra.mxu0 0.0
    %91 = vmatprep.subr.mxu0 0.0
    %92 = vmatpush1.msra.mxu0 0.0
    %93 = vmatprep.subr.mxu0 0.0
    %94 = vmatpush1.msra.mxu0 0.0
    %95 = vmatprep.subr.mxu0 0.0
    %96 = vmatpush1.msra.mxu0 0.0
    %97 = vmatprep.subr.mxu0 0.0
    %98 = vmatpush1.msra.mxu0 0.0
    %99 = vmatprep.subr.mxu0 0.0
    %100 = vmatpush1.msra.mxu0 0.0
    %101 = vmatprep.subr.mxu0 0.0
    %102 = vmatpush1.msra.mxu0 0.0
    %103 = vmatprep.subr.mxu0 0.0
    %104 = vmatpush1.msra.mxu0 0.0
    %105 = vmatprep.subr.mxu0 0.0
    %106 = vmatpush1.msra.mxu0 0.0
    %107 = vmatprep.subr.mxu0 0.0
    %108 = vmatpush1.msra.mxu0 0.0
    %109 = vmatprep.subr.mxu0 0.0
    %110 = vmatpush1.msra.mxu0 0.0
    %111 = vmatprep.subr.mxu0 0.0
    %112 = vmatpush1.msra.mxu0 0.0
    %113 = vmatprep.subr.mxu0 0.0
    %114 = vmatpush1.msra.mxu0 0.0
    %115 = vmatprep.subr.mxu0 0.0
    %116 = vmatpush1.msra.mxu0 0.0
    %117 = vmatprep.subr.mxu0 0.0
    %118 = vmatpush1.msra.mxu0 0.0
    %119 = vmatprep.subr.mxu0 0.0
    %120 = vmatpush1.msra.mxu0 0.0
    %121 = vmatprep.subr.mxu0 0.0
    %122 = vmatpush1.msra.mxu0 0.0
    %123 = vmatprep.subr.mxu0 0.0
    %124 = vmatpush1.msra.mxu0 0.0
    %125 = vmatprep.mubr.f32.mxu0 0.0
    %126 = vmatmul.mubr.f32.gmra.mrb[0].mxu0 %v59
    %v127 = vpop.f32.mrb[0].mxu0
    %v128 = vadd.f32 0.0, %v127
    %v129 = vpop.f32.mrb[0].mxu0
    %v130 = vadd.f32 0.0, %v129
    %131 = vdwg.mxu0
    %vm132 = vcmask 523264
    %v134 = vsel %vm132, %v31, 0
    %136 = vmatprep.subr.mxu0 %v33
    %137 = vmatpush1.msra.mxu0 %v32
    %138 = vmatprep.subr.mxu0 %v35
    %139 = vmatpush1.msra.mxu0 %v34
    %140 = vmatprep.subr.mxu0 %v37
    %141 = vmatpush1.msra.mxu0 %v36
    %142 = vmatprep.subr.mxu0 %v39
    %143 = vmatpush1.msra.mxu0 %v38
    %144 = vmatprep.subr.mxu0 %v41
    %145 = vmatpush1.msra.mxu0 %v40
    %146 = vmatprep.subr.mxu0 %v43
    %147 = vmatpush1.msra.mxu0 %v42
    %148 = vmatprep.subr.mxu0 %v45
    %149 = vmatpush1.msra.mxu0 %v44
    %150 = vmatprep.subr.mxu0 %v47
    %151 = vmatpush1.msra.mxu0 %v46
    %152 = vmatprep.subr.mxu0 0.0
    %153 = vmatpush1.msra.mxu0 0.0
    %154 = vmatprep.subr.mxu0 0.0
    %155 = vmatpush1.msra.mxu0 0.0
    %156 = vmatprep.subr.mxu0 0.0
    %157 = vmatpush1.msra.mxu0 0.0
    %158 = vmatprep.subr.mxu0 0.0
    %159 = vmatpush1.msra.mxu0 0.0
    %160 = vmatprep.subr.mxu0 0.0
    %161 = vmatpush1.msra.mxu0 0.0
    %162 = vmatprep.subr.mxu0 0.0
    %163 = vmatpush1.msra.mxu0 0.0
    %164 = vmatprep.subr.mxu0 0.0
    %165 = vmatpush1.msra.mxu0 0.0
    %166 = vmatprep.subr.mxu0 0.0
    %167 = vmatpush1.msra.mxu0 0.0
    %168 = vmatprep.subr.mxu0 0.0
    %169 = vmatpush1.msra.mxu0 0.0
    %170 = vmatprep.subr.mxu0 0.0
    %171 = vmatpush1.msra.mxu0 0.0
    %172 = vmatprep.subr.mxu0 0.0
    %173 = vmatpush1.msra.mxu0 0.0
    %174 = vmatprep.subr.mxu0 0.0
    %175 = vmatpush1.msra.mxu0 0.0
    %176 = vmatprep.subr.mxu0 0.0
    %177 = vmatpush1.msra.mxu0 0.0
    %178 = vmatprep.subr.mxu0 0.0
    %179 = vmatpush1.msra.mxu0 0.0
    %180 = vmatprep.subr.mxu0 0.0
    %181 = vmatpush1.msra.mxu0 0.0
    %182 = vmatprep.subr.mxu0 0.0
    %183 = vmatpush1.msra.mxu0 0.0
    %184 = vmatprep.subr.mxu0 0.0
    %185 = vmatpush1.msra.mxu0 0.0
    %186 = vmatprep.subr.mxu0 0.0
    %187 = vmatpush1.msra.mxu0 0.0
    %188 = vmatprep.subr.mxu0 0.0
    %189 = vmatpush1.msra.mxu0 0.0
    %190 = vmatprep.subr.mxu0 0.0
    %191 = vmatpush1.msra.mxu0 0.0
    %192 = vmatprep.subr.mxu0 0.0
    %193 = vmatpush1.msra.mxu0 0.0
    %194 = vmatprep.subr.mxu0 0.0
    %195 = vmatpush1.msra.mxu0 0.0
    %196 = vmatprep.subr.mxu0 0.0
    %197 = vmatpush1.msra.mxu0 0.0
    %198 = vmatprep.subr.mxu0 0.0
    %199 = vmatpush1.msra.mxu0 0.0
    %200 = vmatprep.mubr.f32.mxu0 0.0
    %201 = vmatmul.mubr.f32.gmra.mrb[0].mxu0 %v134
    %v202 = vpop.f32.mrb[0].mxu0
    %v203 = vadd.f32 %v128, %v202
    %v204 = vpop.f32.mrb[0].mxu0
    %v205 = vadd.f32 %v130, %v204
    %206 = vdwg.mxu0
    %v207 = vmul.f32 %v203, %v203
    %v208 = vmul.f32 %v205, %v205
    %v209 = vadd.f32 %v207, %v208
    %210 = vst [vmem:[%s4] sm:$0xff] %v209
    // Predicated region
    $region22: #{_lambda_.1} parent=1 // pred_check
      _
    $region23: #{_lambda_.1} parent=1 // pred_check_branch
      %212 = sbr.rel (0) target = $region25
    $region24: #{_lambda_.1} parent=1 // pred_region
      _
    $region25: #{_lambda_.1} parent=1 // pred_fallthru
      _
    // Predicated region
    $region26: #{_lambda_.1} parent=1 // pred_check
      _
    $region27: #{_lambda_.1} parent=1 // pred_check_branch
      %214 = sbr.rel (0) target = $region29
    $region28: #{_lambda_.1} parent=1 // pred_region
      _
    $region29: #{_lambda_.1} parent=1 // pred_fallthru
      _
    %215 = vsyncpa [#allocation3], 1

</llo_original>
